<compile_context>
chip_gen: v5e
topology: v5e:2x2
jax: 0.10.0
libtpu: 0.0.40
codegen_flags: <defaults>
</compile_context>

<pallas_src>
import functools

import jax
import jax.numpy as jnp
import numpy as np
from jax.experimental import pallas as pl
from jax.experimental.pallas import tpu as pltpu

_INV_SQRT2 = 0.7071067811865476

# Safe scoped-VMEM request on v5e/v6e (128 MiB physical) and v7x (64 MiB physical).
_VMEM_LIMIT_BYTES = 32 * 1024 * 1024


def _gelu_exact(x):
    # nn.GELU default (erf-based) gelu
    return 0.5 * x * (1.0 + jax.lax.erf(x * _INV_SQRT2))


def _cdiv(a, b):
    return (a + b - 1) // b


def _pick_row_tile(n_rows, max_tile):
    """Row tile for the FFN/BN kernels.

    VMEM budget per tile ~ 2x double-buffered (tile*(D+d_ff)*4B) + weights.
    512 rows default works under 32 MiB for typical PatchTST sizes; shrink max_tile
    for v7x (64 MiB physical VMEM) / large d_ff.  Rows past n_rows in a partial last
    tile are masked out of the BN statistics and clipped on writeback.
    """
    if n_rows <= max_tile:
        return n_rows
    return max(8, max_tile - (max_tile % 8))


# --------------------------- kernel A: attention ---------------------------------
def _attention_kernel(src_ref, wqkv_ref, bqkv_ref, wo_ref, bo_ref,
                      x1_ref, psum_ref, psumsq_ref,
                      *, n_heads, scale, compute_dtype):
    src = src_ref[...].astype(jnp.float32)                        # (L, D)
    L, D = src.shape
    dk = D // n_heads

    # Fused QKV projection: one full-width (L, D) @ (D, 3D) MXU matmul.
    qkv = jnp.dot(src.astype(compute_dtype), wqkv_ref[...],
                  preferred_element_type=jnp.float32) + bqkv_ref[...]
    q = qkv[:, :D] * scale
    k = qkv[:, D:2 * D]
    v = qkv[:, 2 * D:]

    # Per-head scaled-dot-product attention; heads merged back lane-dense.
    ctx_heads = []
    for h in range(n_heads):
        sl = slice(h * dk, (h + 1) * dk)
        qh = q[:, sl].astype(compute_dtype)
        kh = k[:, sl].astype(compute_dtype)
        vh = v[:, sl].astype(compute_dtype)
        s = jax.lax.dot_general(qh, kh, (((1,), (1,)), ((), ())),
                                preferred_element_type=jnp.float32)   # (L, L)
        m = jnp.max(s, axis=-1, keepdims=True)
        e = jnp.exp(s - m)
        p = e * pl.reciprocal(jnp.sum(e, axis=-1, keepdims=True), approx=True)
        ctx_heads.append(jnp.dot(p.astype(compute_dtype), vh,
                                 preferred_element_type=jnp.float32))
    ctx = jnp.concatenate(ctx_heads, axis=-1)                     # (L, D)

    # Output projection (+ proj_dropout = identity) and residual, fused here so the
    # (B*L, D) context never makes a separate HBM round trip.
    attn_out = jnp.dot(ctx.astype(compute_dtype), wo_ref[...],
                       preferred_element_type=jnp.float32) + bo_ref[...]
    x1 = src + attn_out

    x1_ref[...] = x1.astype(x1_ref.dtype)
    # Partial stats for BatchNorm #1 (per-batch partial sums; reduced outside).
    psum_ref[...] = jnp.sum(x1, axis=0, keepdims=True)
    psumsq_ref[...] = jnp.sum(x1 * x1, axis=0, keepdims=True)


# ---------------------- kernel C: BN1 normalize + FFN + residual -----------------
def _bn_ffn_kernel(x_ref, mean_ref, var_ref, g_ref, be_ref,
                   w1_ref, b1_ref, w2_ref, b2_ref,
                   y_ref, psum_ref, psumsq_ref,
                   *, eps, n_rows, tile_rows, compute_dtype):
    x = x_ref[...].astype(jnp.float32)                            # (T, D)
    inv = jax.lax.rsqrt(var_ref[...] + eps)
    xn = (x - mean_ref[...]) * inv * g_ref[...] + be_ref[...]

    h = jnp.dot(xn.astype(compute_dtype), w1_ref[...],
                preferred_element_type=jnp.float32) + b1_ref[...]
    h = _gelu_exact(h)
    ff = jnp.dot(h.astype(compute_dtype), w2_ref[...],
                 preferred_element_type=jnp.float32) + b2_ref[...]
    y = xn + ff
    y_ref[...] = y.astype(y_ref.dtype)

    # Partial stats for BatchNorm #2; mask rows past n_rows (partial last tile).
    row0 = pl.program_id(0) * tile_rows
    rows = row0 + jax.lax.broadcasted_iota(jnp.int32, (tile_rows, 1), 0)
    ym = jnp.where(rows < n_rows, y, 0.0)
    psum_ref[...] = jnp.sum(ym, axis=0, keepdims=True)
    psumsq_ref[...] = jnp.sum(ym * ym, axis=0, keepdims=True)


# ------------------------- kernel D: apply BatchNorm #2 --------------------------
def _bn_apply_kernel(y_ref, mean_ref, var_ref, g_ref, be_ref, out_ref, *, eps):
    y = y_ref[...].astype(jnp.float32)
    out_ref[...] = ((y - mean_ref[...]) * jax.lax.rsqrt(var_ref[...] + eps)
                    * g_ref[...] + be_ref[...]).astype(out_ref.dtype)


# ----------------------------------- wrapper -------------------------------------
def tst_encoder_layer(src, params, *, n_heads, eps=1e-5,
                      compute_dtype=jnp.float32, max_row_tile=512):
    """Forward pass of TSTEncoderLayer (norm='BatchNorm', pre_norm=False,
    res_attention=False, dropout=0, activation='gelu').

    compute_dtype: dtype fed to the MXU (and used for the x1 / y intermediates).
    Use jnp.bfloat16 on v6e/v7x for ~2x MXU throughput; accumulation stays f32.
    """
    B, L, D = src.shape
    H = n_heads
    dk = D // H
    d_ff = params["W1"].shape[1]
    scale = 1.0 / (dk ** 0.5)
    N = B * L
    f32 = jnp.float32
    cd = compute_dtype

    # Fused QKV weight/bias (kept VMEM-resident across the batch grid).
    wqkv = jnp.concatenate([params["Wq"], params["Wk"], params["Wv"]], axis=1).astype(cd)
    bqkv = jnp.concatenate([params["bq"], params["bk"], params["bv"]]).reshape(1, 3 * D).astype(f32)
    wo = params["Wo"].astype(cd)
    bo = params["bo"].reshape(1, D).astype(f32)

    const2 = lambda b: (0, 0)

    # ---- kernel A: attention + out-proj + residual + BN1 partial stats ----------
    x1, ps1, pss1 = pl.pallas_call(
        functools.partial(_attention_kernel, n_heads=H, scale=scale, compute_dtype=cd),
        grid=(B,),
        in_specs=[
            pl.BlockSpec((None, L, D), lambda b: (b, 0, 0)),   # src[b]
            pl.BlockSpec((D, 3 * D), const2),                  # Wqkv (resident)
            pl.BlockSpec((1, 3 * D), const2),                  # bqkv
            pl.BlockSpec((D, D), const2),                      # Wo   (resident)
            pl.BlockSpec((1, D), const2),                      # bo
        ],
        out_specs=[
            pl.BlockSpec((None, L, D), lambda b: (b, 0, 0)),   # x1[b]  (lane-dense D)
            pl.BlockSpec((None, 1, D), lambda b: (b, 0, 0)),   # partial sum
            pl.BlockSpec((None, 1, D), lambda b: (b, 0, 0)),   # partial sum of squares
        ],
        out_shape=[
            jax.ShapeDtypeStruct((B, L, D), cd),
            jax.ShapeDtypeStruct((B, 1, D), f32),
            jax.ShapeDtypeStruct((B, 1, D), f32),
        ],
        compiler_params=pltpu.CompilerParams(
            dimension_semantics=("parallel",),
            vmem_limit_bytes=_VMEM_LIMIT_BYTES),
    )(src, wqkv, bqkv, wo, bo)

    # BN1 global statistics (tiny (B,1,D) reduction -> jnp glue).
    inv_n = 1.0 / N
    mean1 = jnp.sum(ps1, axis=0) * inv_n                       # (1, D)
    var1 = jnp.sum(pss1, axis=0) * inv_n - mean1 * mean1

    x1_2d = x1.reshape(N, D)
    tile = _pick_row_tile(N, max_row_tile)
    n_tiles = _cdiv(N, tile)

    g1 = params["g1"].reshape(1, D).astype(f32)
    be1 = params["be1"].reshape(1, D).astype(f32)
    w1 = params["W1"].astype(cd)
    b1 = params["b1"].reshape(1, d_ff).astype(f32)
    w2 = params["W2"].astype(cd)
    b2 = params["b2"].reshape(1, D).astype(f32)

    const1 = lambda i: (0, 0)

    # ---- kernel C: BN1 normalize + FFN + residual + BN2 partial stats -----------
    y, ps2, pss2 = pl.pallas_call(
        functools.partial(_bn_ffn_kernel, eps=eps, n_rows=N, tile_rows=tile,
                          compute_dtype=cd),
        grid=(n_tiles,),
        in_specs=[
            pl.BlockSpec((tile, D), lambda i: (i, 0)),         # x1 row tile
            pl.BlockSpec((1, D), const1),                      # mean1
            pl.BlockSpec((1, D), const1),                      # var1
            pl.BlockSpec((1, D), const1),                      # g1
            pl.BlockSpec((1, D), const1),                      # be1
            pl.BlockSpec((D, d_ff), const1),                   # W1 (resident)
            pl.BlockSpec((1, d_ff), const1),                   # b1
            pl.BlockSpec((d_ff, D), const1),                   # W2 (resident)
            pl.BlockSpec((1, D), const1),                      # b2
        ],
        out_specs=[
            pl.BlockSpec((tile, D), lambda i: (i, 0)),         # y row tile (lane-dense)
            pl.BlockSpec((None, 1, D), lambda i: (i, 0, 0)),   # per-tile sum
            pl.BlockSpec((None, 1, D), lambda i: (i, 0, 0)),   # per-tile sum of squares
        ],
        out_shape=[
            jax.ShapeDtypeStruct((N, D), cd),
            jax.ShapeDtypeStruct((n_tiles, 1, D), f32),
            jax.ShapeDtypeStruct((n_tiles, 1, D), f32),
        ],
        compiler_params=pltpu.CompilerParams(
            dimension_semantics=("parallel",),
            vmem_limit_bytes=_VMEM_LIMIT_BYTES),
    )(x1_2d, mean1, var1, g1, be1, w1, b1, w2, b2)

    # BN2 global statistics.
    mean2 = jnp.sum(ps2, axis=0) * inv_n
    var2 = jnp.sum(pss2, axis=0) * inv_n - mean2 * mean2

    # ---- kernel D: apply BN2 -----------------------------------------------------
    out2d = pl.pallas_call(
        functools.partial(_bn_apply_kernel, eps=eps),
        grid=(n_tiles,),
        in_specs=[
            pl.BlockSpec((tile, D), lambda i: (i, 0)),
            pl.BlockSpec((1, D), const1),
            pl.BlockSpec((1, D), const1),
            pl.BlockSpec((1, D), const1),
            pl.BlockSpec((1, D), const1),
        ],
        out_specs=pl.BlockSpec((tile, D), lambda i: (i, 0)),
        out_shape=jax.ShapeDtypeStruct((N, D), src.dtype),
        compiler_params=pltpu.CompilerParams(
            dimension_semantics=("parallel",),
            vmem_limit_bytes=_VMEM_LIMIT_BYTES),
    )(y, mean2, var2,
      params["g2"].reshape(1, D).astype(f32),
      params["be2"].reshape(1, D).astype(f32))

    return out2d.reshape(B, L, D)


# ------------------------- pure-JAX reference (for checking) --------------------
def tst_encoder_layer_ref(src, params, *, n_heads, eps=1e-5):
    B, L, D = src.shape
    H = n_heads
    dk = D // H
    hp = jax.lax.Precision.HIGHEST

    def proj(x, w, b):
        return jnp.einsum("bld,de->ble", x, w, precision=hp) + b

    q = proj(src, params["Wq"], params["bq"]).reshape(B, L, H, dk).transpose(0, 2, 1, 3)
    k = proj(src, params["Wk"], params["bk"]).reshape(B, L, H, dk).transpose(0, 2, 1, 3)
    v = proj(src, params["Wv"], params["bv"]).reshape(B, L, H, dk).transpose(0, 2, 1, 3)
    scores = jnp.einsum("bhld,bhmd->bhlm", q, k, precision=hp) / (dk ** 0.5)
    attn = jax.nn.softmax(scores, axis=-1)
    ctx = jnp.einsum("bhlm,bhmd->bhld", attn, v, precision=hp)
    ctx = ctx.transpose(0, 2, 1, 3).reshape(B, L, D)

    x = src + proj(ctx, params["Wo"], params["bo"])

    def bn(x, g, b):
        x2 = x.reshape(B * L, D)
        m = x2.mean(axis=0)
        var = ((x2 - m) ** 2).mean(axis=0)
        return ((x2 - m) / jnp.sqrt(var + eps) * g + b).reshape(B, L, D)

    x = bn(x, params["g1"], params["be1"])
    h = _gelu_exact(proj(x, params["W1"], params["b1"]))
    y = x + proj(h, params["W2"], params["b2"])
    return bn(y, params["g2"], params["be2"])


def init_params(key, d_model, d_ff):
    ks = jax.random.split(key, 12)
    s = 0.1
    p = {
        "Wq": s * jax.random.normal(ks[0], (d_model, d_model), jnp.float32),
        "bq": s * jax.random.normal(ks[1], (d_model,), jnp.float32),
        "Wk": s * jax.random.normal(ks[2], (d_model, d_model), jnp.float32),
        "bk": s * jax.random.normal(ks[3], (d_model,), jnp.float32),
        "Wv": s * jax.random.normal(ks[4], (d_model, d_model), jnp.float32),
        "bv": s * jax.random.normal(ks[5], (d_model,), jnp.float32),
        "Wo": s * jax.random.normal(ks[6], (d_model, d_model), jnp.float32),
        "bo": s * jax.random.normal(ks[7], (d_model,), jnp.float32),
        "W1": s * jax.random.normal(ks[8], (d_model, d_ff), jnp.float32),
        "b1": s * jax.random.normal(ks[9], (d_ff,), jnp.float32),
        "W2": s * jax.random.normal(ks[10], (d_ff, d_model), jnp.float32),
        "b2": s * jax.random.normal(ks[11], (d_model,), jnp.float32),
        "g1": jnp.ones((d_model,), jnp.float32),   # BatchNorm affine params
        "be1": jnp.zeros((d_model,), jnp.float32),
        "g2": jnp.ones((d_model,), jnp.float32),
        "be2": jnp.zeros((d_model,), jnp.float32),
    }
    return p


if __name__ == "__main__":
    bs, q_len, d_model, n_heads, d_ff = 2, 8, 32, 4, 64

    key = jax.random.PRNGKey(0)
    k_src, k_par = jax.random.split(key)
    src = jax.random.normal(k_src, (bs, q_len, d_model), jnp.float32)
    params = init_params(k_par, d_model, d_ff)

    ref = jax.block_until_ready(tst_encoder_layer_ref(src, params, n_heads=n_heads))

    # f32 MXU path (v5e-friendly)
    out_f32 = jax.block_until_ready(
        tst_encoder_layer(src, params, n_heads=n_heads, compute_dtype=jnp.float32))
    np.testing.assert_allclose(np.asarray(out_f32), np.asarray(ref), atol=2e-2, rtol=2e-2)

    # bf16 MXU path (v6e/v7x): bf16 matmul operands + intermediates, f32 accumulation.
    out_bf16 = jax.block_until_ready(
        tst_encoder_layer(src, params, n_heads=n_heads, compute_dtype=jnp.bfloat16))
    np.testing.assert_allclose(np.asarray(out_bf16), np.asarray(ref), atol=6e-2, rtol=6e-2)

    print("KERNEL_OK")
</pallas_src>

<mosaic_0001>
module attributes {stable_mosaic.version = 11 : i64} {
  func.func @_attention_kernel(%arg0: i32, %arg1: memref<1x8x32xf32, #tpu.memory_space<vmem>>, %arg2: memref<32x96xf32, #tpu.memory_space<vmem>>, %arg3: memref<1x96xf32, #tpu.memory_space<vmem>>, %arg4: memref<32x32xf32, #tpu.memory_space<vmem>>, %arg5: memref<1x32xf32, #tpu.memory_space<vmem>>, %arg6: memref<1x8x32xf32, #tpu.memory_space<vmem>>, %arg7: memref<1x1x32xf32, #tpu.memory_space<vmem>>, %arg8: memref<1x1x32xf32, #tpu.memory_space<vmem>>) attributes {dimension_semantics = [#tpu.dimension_semantics<parallel>], iteration_bounds = array<i64: 2>, scalar_prefetch = 0 : i64, scratch_operands = 0 : i64, tpu.core_type = #tpu.core_type<tc>, window_params = [{transform_indices = @transform_0, window_bounds = array<i64: 1, 8, 32>}, {pipeline_mode = #tpu.pipeline_mode<synchronous>, transform_indices = @transform_1, window_bounds = array<i64: 32, 96>}, {pipeline_mode = #tpu.pipeline_mode<synchronous>, transform_indices = @transform_2, window_bounds = array<i64: 1, 96>}, {pipeline_mode = #tpu.pipeline_mode<synchronous>, transform_indices = @transform_3, window_bounds = array<i64: 32, 32>}, {pipeline_mode = #tpu.pipeline_mode<synchronous>, transform_indices = @transform_4, window_bounds = array<i64: 1, 32>}, {transform_indices = @transform_5, window_bounds = array<i64: 1, 8, 32>}, {transform_indices = @transform_6, window_bounds = array<i64: 1, 1, 32>}, {transform_indices = @transform_7, window_bounds = array<i64: 1, 1, 32>}]} {
    %c0 = arith.constant 0 : index
    %c0_0 = arith.constant 0 : index
    %c0_1 = arith.constant 0 : index
    %0 = vector.load %arg1[%c0, %c0_0, %c0_1] : memref<1x8x32xf32, #tpu.memory_space<vmem>>, vector<1x8x32xf32>
    %1 = vector.shape_cast %0 : vector<1x8x32xf32> to vector<8x32xf32>
    %c0_2 = arith.constant 0 : index
    %c0_3 = arith.constant 0 : index
    %2 = vector.load %arg2[%c0_2, %c0_3] : memref<32x96xf32, #tpu.memory_space<vmem>>, vector<32x96xf32>
    %cst = arith.constant dense<0.000000e+00> : vector<8x96xf32>
    %3 = tpu.matmul %1, %2, %cst {dimension_numbers = #tpu.dot_dimension_numbers<[1], [0], [0], [1], [0, 0, 1, 1], [], []>} : vector<8x32xf32>, vector<32x96xf32>, vector<8x96xf32> -> vector<8x96xf32>
    %c0_4 = arith.constant 0 : index
    %c0_5 = arith.constant 0 : index
    %4 = vector.load %arg3[%c0_4, %c0_5] : memref<1x96xf32, #tpu.memory_space<vmem>>, vector<1x96xf32>
    %5 = vector.broadcast %4 : vector<1x96xf32> to vector<8x96xf32>
    %6 = arith.addf %3, %5 : vector<8x96xf32>
    %7 = vector.extract_strided_slice %6 {offsets = [0, 0], sizes = [8, 32], strides = [1, 1]} : vector<8x96xf32> to vector<8x32xf32>
    %cst_6 = arith.constant 0.353553385 : f32
    %8 = vector.broadcast %cst_6 : f32 to vector<8x32xf32>
    %9 = arith.mulf %7, %8 : vector<8x32xf32>
    %10 = vector.extract_strided_slice %6 {offsets = [0, 32], sizes = [8, 32], strides = [1, 1]} : vector<8x96xf32> to vector<8x32xf32>
    %11 = vector.extract_strided_slice %6 {offsets = [0, 64], sizes = [8, 32], strides = [1, 1]} : vector<8x96xf32> to vector<8x32xf32>
    %12 = vector.extract_strided_slice %9 {offsets = [0, 0], sizes = [8, 8], strides = [1, 1]} : vector<8x32xf32> to vector<8x8xf32>
    %13 = vector.extract_strided_slice %10 {offsets = [0, 0], sizes = [8, 8], strides = [1, 1]} : vector<8x32xf32> to vector<8x8xf32>
    %14 = vector.extract_strided_slice %11 {offsets = [0, 0], sizes = [8, 8], strides = [1, 1]} : vector<8x32xf32> to vector<8x8xf32>
    %cst_7 = arith.constant dense<0.000000e+00> : vector<8x8xf32>
    %15 = tpu.matmul %12, %13, %cst_7 {dimension_numbers = #tpu.dot_dimension_numbers<[1], [1], [0], [0], [0, 0, 1, 0], [], []>} : vector<8x8xf32>, vector<8x8xf32>, vector<8x8xf32> -> vector<8x8xf32>
    %cst_8 = arith.constant dense<0xFF800000> : vector<8xf32>
    %16 = vector.multi_reduction <maximumf>, %15, %cst_8 [1] : vector<8x8xf32> to vector<8xf32>
    %17 = vector.shape_cast %16 : vector<8xf32> to vector<8x1xf32>
    %18 = vector.broadcast %17 : vector<8x1xf32> to vector<8x8xf32>
    %19 = arith.subf %15, %18 : vector<8x8xf32>
    %20 = math.exp %19 : vector<8x8xf32>
    %cst_9 = arith.constant dense<0.000000e+00> : vector<8xf32>
    %21 = vector.multi_reduction <add>, %20, %cst_9 [1] : vector<8x8xf32> to vector<8xf32>
    %22 = vector.shape_cast %21 : vector<8xf32> to vector<8x1xf32>
    %23 = tpu.reciprocal %22 {approx = true} : vector<8x1xf32> -> vector<8x1xf32>
    %24 = vector.broadcast %23 : vector<8x1xf32> to vector<8x8xf32>
    %25 = arith.mulf %20, %24 : vector<8x8xf32>
    %cst_10 = arith.constant dense<0.000000e+00> : vector<8x8xf32>
    %26 = tpu.matmul %25, %14, %cst_10 {dimension_numbers = #tpu.dot_dimension_numbers<[1], [0], [0], [1], [0, 0, 1, 1], [], []>} : vector<8x8xf32>, vector<8x8xf32>, vector<8x8xf32> -> vector<8x8xf32>
    %27 = vector.extract_strided_slice %9 {offsets = [0, 8], sizes = [8, 8], strides = [1, 1]} : vector<8x32xf32> to vector<8x8xf32>
    %28 = vector.extract_strided_slice %10 {offsets = [0, 8], sizes = [8, 8], strides = [1, 1]} : vector<8x32xf32> to vector<8x8xf32>
    %29 = vector.extract_strided_slice %11 {offsets = [0, 8], sizes = [8, 8], strides = [1, 1]} : vector<8x32xf32> to vector<8x8xf32>
    %cst_11 = arith.constant dense<0.000000e+00> : vector<8x8xf32>
    %30 = tpu.matmul %27, %28, %cst_11 {dimension_numbers = #tpu.dot_dimension_numbers<[1], [1], [0], [0], [0, 0, 1, 0], [], []>} : vector<8x8xf32>, vector<8x8xf32>, vector<8x8xf32> -> vector<8x8xf32>
    %cst_12 = arith.constant dense<0xFF800000> : vector<8xf32>
    %31 = vector.multi_reduction <maximumf>, %30, %cst_12 [1] : vector<8x8xf32> to vector<8xf32>
    %32 = vector.shape_cast %31 : vector<8xf32> to vector<8x1xf32>
    %33 = vector.broadcast %32 : vector<8x1xf32> to vector<8x8xf32>
    %34 = arith.subf %30, %33 : vector<8x8xf32>
    %35 = math.exp %34 : vector<8x8xf32>
    %cst_13 = arith.constant dense<0.000000e+00> : vector<8xf32>
    %36 = vector.multi_reduction <add>, %35, %cst_13 [1] : vector<8x8xf32> to vector<8xf32>
    %37 = vector.shape_cast %36 : vector<8xf32> to vector<8x1xf32>
    %38 = tpu.reciprocal %37 {approx = true} : vector<8x1xf32> -> vector<8x1xf32>
    %39 = vector.broadcast %38 : vector<8x1xf32> to vector<8x8xf32>
    %40 = arith.mulf %35, %39 : vector<8x8xf32>
    %cst_14 = arith.constant dense<0.000000e+00> : vector<8x8xf32>
    %41 = tpu.matmul %40, %29, %cst_14 {dimension_numbers = #tpu.dot_dimension_numbers<[1], [0], [0], [1], [0, 0, 1, 1], [], []>} : vector<8x8xf32>, vector<8x8xf32>, vector<8x8xf32> -> vector<8x8xf32>
    %42 = vector.extract_strided_slice %9 {offsets = [0, 16], sizes = [8, 8], strides = [1, 1]} : vector<8x32xf32> to vector<8x8xf32>
    %43 = vector.extract_strided_slice %10 {offsets = [0, 16], sizes = [8, 8], strides = [1, 1]} : vector<8x32xf32> to vector<8x8xf32>
    %44 = vector.extract_strided_slice %11 {offsets = [0, 16], sizes = [8, 8], strides = [1, 1]} : vector<8x32xf32> to vector<8x8xf32>
    %cst_15 = arith.constant dense<0.000000e+00> : vector<8x8xf32>
    %45 = tpu.matmul %42, %43, %cst_15 {dimension_numbers = #tpu.dot_dimension_numbers<[1], [1], [0], [0], [0, 0, 1, 0], [], []>} : vector<8x8xf32>, vector<8x8xf32>, vector<8x8xf32> -> vector<8x8xf32>
    %cst_16 = arith.constant dense<0xFF800000> : vector<8xf32>
    %46 = vector.multi_reduction <maximumf>, %45, %cst_16 [1] : vector<8x8xf32> to vector<8xf32>
    %47 = vector.shape_cast %46 : vector<8xf32> to vector<8x1xf32>
    %48 = vector.broadcast %47 : vector<8x1xf32> to vector<8x8xf32>
    %49 = arith.subf %45, %48 : vector<8x8xf32>
    %50 = math.exp %49 : vector<8x8xf32>
    %cst_17 = arith.constant dense<0.000000e+00> : vector<8xf32>
    %51 = vector.multi_reduction <add>, %50, %cst_17 [1] : vector<8x8xf32> to vector<8xf32>
    %52 = vector.shape_cast %51 : vector<8xf32> to vector<8x1xf32>
    %53 = tpu.reciprocal %52 {approx = true} : vector<8x1xf32> -> vector<8x1xf32>
    %54 = vector.broadcast %53 : vector<8x1xf32> to vector<8x8xf32>
    %55 = arith.mulf %50, %54 : vector<8x8xf32>
    %cst_18 = arith.constant dense<0.000000e+00> : vector<8x8xf32>
    %56 = tpu.matmul %55, %44, %cst_18 {dimension_numbers = #tpu.dot_dimension_numbers<[1], [0], [0], [1], [0, 0, 1, 1], [], []>} : vector<8x8xf32>, vector<8x8xf32>, vector<8x8xf32> -> vector<8x8xf32>
    %57 = vector.extract_strided_slice %9 {offsets = [0, 24], sizes = [8, 8], strides = [1, 1]} : vector<8x32xf32> to vector<8x8xf32>
    %58 = vector.extract_strided_slice %10 {offsets = [0, 24], sizes = [8, 8], strides = [1, 1]} : vector<8x32xf32> to vector<8x8xf32>
    %59 = vector.extract_strided_slice %11 {offsets = [0, 24], sizes = [8, 8], strides = [1, 1]} : vector<8x32xf32> to vector<8x8xf32>
    %cst_19 = arith.constant dense<0.000000e+00> : vector<8x8xf32>
    %60 = tpu.matmul %57, %58, %cst_19 {dimension_numbers = #tpu.dot_dimension_numbers<[1], [1], [0], [0], [0, 0, 1, 0], [], []>} : vector<8x8xf32>, vector<8x8xf32>, vector<8x8xf32> -> vector<8x8xf32>
    %cst_20 = arith.constant dense<0xFF800000> : vector<8xf32>
    %61 = vector.multi_reduction <maximumf>, %60, %cst_20 [1] : vector<8x8xf32> to vector<8xf32>
    %62 = vector.shape_cast %61 : vector<8xf32> to vector<8x1xf32>
    %63 = vector.broadcast %62 : vector<8x1xf32> to vector<8x8xf32>
    %64 = arith.subf %60, %63 : vector<8x8xf32>
    %65 = math.exp %64 : vector<8x8xf32>
    %cst_21 = arith.constant dense<0.000000e+00> : vector<8xf32>
    %66 = vector.multi_reduction <add>, %65, %cst_21 [1] : vector<8x8xf32> to vector<8xf32>
    %67 = vector.shape_cast %66 : vector<8xf32> to vector<8x1xf32>
    %68 = tpu.reciprocal %67 {approx = true} : vector<8x1xf32> -> vector<8x1xf32>
    %69 = vector.broadcast %68 : vector<8x1xf32> to vector<8x8xf32>
    %70 = arith.mulf %65, %69 : vector<8x8xf32>
    %cst_22 = arith.constant dense<0.000000e+00> : vector<8x8xf32>
    %71 = tpu.matmul %70, %59, %cst_22 {dimension_numbers = #tpu.dot_dimension_numbers<[1], [0], [0], [1], [0, 0, 1, 1], [], []>} : vector<8x8xf32>, vector<8x8xf32>, vector<8x8xf32> -> vector<8x8xf32>
    %72 = tpu.concatenate %26, %41, %56, %71 in 1 : vector<8x8xf32>, vector<8x8xf32>, vector<8x8xf32>, vector<8x8xf32> -> vector<8x32xf32>
    %c0_23 = arith.constant 0 : index
    %c0_24 = arith.constant 0 : index
    %73 = vector.load %arg4[%c0_23, %c0_24] : memref<32x32xf32, #tpu.memory_space<vmem>>, vector<32x32xf32>
    %cst_25 = arith.constant dense<0.000000e+00> : vector<8x32xf32>
    %74 = tpu.matmul %72, %73, %cst_25 {dimension_numbers = #tpu.dot_dimension_numbers<[1], [0], [0], [1], [0, 0, 1, 1], [], []>} : vector<8x32xf32>, vector<32x32xf32>, vector<8x32xf32> -> vector<8x32xf32>
    %c0_26 = arith.constant 0 : index
    %c0_27 = arith.constant 0 : index
    %75 = vector.load %arg5[%c0_26, %c0_27] : memref<1x32xf32, #tpu.memory_space<vmem>>, vector<1x32xf32>
    %76 = vector.broadcast %75 : vector<1x32xf32> to vector<8x32xf32>
    %77 = arith.addf %74, %76 : vector<8x32xf32>
    %78 = arith.addf %1, %77 : vector<8x32xf32>
    %c0_28 = arith.constant 0 : index
    %c0_29 = arith.constant 0 : index
    %c0_30 = arith.constant 0 : index
    %79 = vector.load %arg6[%c0_28, %c0_29, %c0_30] : memref<1x8x32xf32, #tpu.memory_space<vmem>>, vector<1x8x32xf32>
    %80 = vector.shape_cast %79 : vector<1x8x32xf32> to vector<8x32xf32>
    %81 = vector.shape_cast %78 : vector<8x32xf32> to vector<1x8x32xf32>
    tpu.vector_store %arg6[%c0_28, %c0_29, %c0_30], %81 {strides = array<i32>} : memref<1x8x32xf32, #tpu.memory_space<vmem>>, vector<1x8x32xf32>,
    %cst_31 = arith.constant dense<0.000000e+00> : vector<32xf32>
    %82 = vector.multi_reduction <add>, %78, %cst_31 [0] : vector<8x32xf32> to vector<32xf32>
    %83 = vector.shape_cast %82 : vector<32xf32> to vector<1x32xf32>
    %c0_32 = arith.constant 0 : index
    %c0_33 = arith.constant 0 : index
    %c0_34 = arith.constant 0 : index
    %84 = vector.load %arg7[%c0_32, %c0_33, %c0_34] : memref<1x1x32xf32, #tpu.memory_space<vmem>>, vector<1x1x32xf32>
    %85 = vector.shape_cast %84 : vector<1x1x32xf32> to vector<1x32xf32>
    %86 = vector.shape_cast %83 : vector<1x32xf32> to vector<1x1x32xf32>
    tpu.vector_store %arg7[%c0_32, %c0_33, %c0_34], %86 {strides = array<i32>} : memref<1x1x32xf32, #tpu.memory_space<vmem>>, vector<1x1x32xf32>,
    %87 = arith.mulf %78, %78 : vector<8x32xf32>
    %cst_35 = arith.constant dense<0.000000e+00> : vector<32xf32>
    %88 = vector.multi_reduction <add>, %87, %cst_35 [0] : vector<8x32xf32> to vector<32xf32>
    %89 = vector.shape_cast %88 : vector<32xf32> to vector<1x32xf32>
    %c0_36 = arith.constant 0 : index
    %c0_37 = arith.constant 0 : index
    %c0_38 = arith.constant 0 : index
    %90 = vector.load %arg8[%c0_36, %c0_37, %c0_38] : memref<1x1x32xf32, #tpu.memory_space<vmem>>, vector<1x1x32xf32>
    %91 = vector.shape_cast %90 : vector<1x1x32xf32> to vector<1x32xf32>
    %92 = vector.shape_cast %89 : vector<1x32xf32> to vector<1x1x32xf32>
    tpu.vector_store %arg8[%c0_36, %c0_37, %c0_38], %92 {strides = array<i32>} : memref<1x1x32xf32, #tpu.memory_space<vmem>>, vector<1x1x32xf32>,
    return
  }
  func.func @transform_0(%arg0: i32) -> (i32, i32, i32) {
    %c0_i32 = arith.constant 0 : i32
    %c0_i32_0 = arith.constant 0 : i32
    %c0_i32_1 = arith.constant 0 : i32
    return %arg0, %c0_i32, %c0_i32_0 : i32, i32, i32
  }
  func.func @transform_1(%arg0: i32) -> (i32, i32) {
    %c0_i32 = arith.constant 0 : i32
    %c0_i32_0 = arith.constant 0 : i32
    %c0_i32_1 = arith.constant 0 : i32
    return %c0_i32, %c0_i32_0 : i32, i32
  }
  func.func @transform_2(%arg0: i32) -> (i32, i32) {
    %c0_i32 = arith.constant 0 : i32
    %c0_i32_0 = arith.constant 0 : i32
    %c0_i32_1 = arith.constant 0 : i32
    return %c0_i32, %c0_i32_0 : i32, i32
  }
  func.func @transform_3(%arg0: i32) -> (i32, i32) {
    %c0_i32 = arith.constant 0 : i32
    %c0_i32_0 = arith.constant 0 : i32
    %c0_i32_1 = arith.constant 0 : i32
    return %c0_i32, %c0_i32_0 : i32, i32
  }
  func.func @transform_4(%arg0: i32) -> (i32, i32) {
    %c0_i32 = arith.constant 0 : i32
    %c0_i32_0 = arith.constant 0 : i32
    %c0_i32_1 = arith.constant 0 : i32
    return %c0_i32, %c0_i32_0 : i32, i32
  }
  func.func @transform_5(%arg0: i32) -> (i32, i32, i32) {
    %c0_i32 = arith.constant 0 : i32
    %c0_i32_0 = arith.constant 0 : i32
    %c0_i32_1 = arith.constant 0 : i32
    return %arg0, %c0_i32, %c0_i32_0 : i32, i32, i32
  }
  func.func @transform_6(%arg0: i32) -> (i32, i32, i32) {
    %c0_i32 = arith.constant 0 : i32
    %c0_i32_0 = arith.constant 0 : i32
    %c0_i32_1 = arith.constant 0 : i32
    return %arg0, %c0_i32, %c0_i32_0 : i32, i32, i32
  }
  func.func @transform_7(%arg0: i32) -> (i32, i32, i32) {
    %c0_i32 = arith.constant 0 : i32
    %c0_i32_0 = arith.constant 0 : i32
    %c0_i32_1 = arith.constant 0 : i32
    return %arg0, %c0_i32, %c0_i32_0 : i32, i32, i32
  }
}

</mosaic_0001>

<llo_original>
// kernel: tpu_custom_call.1
$region0: #{tpu_custom_call.1}
  #allocation0 [shape = 'u32[]', space=smem, size = 0x4, offset = 0x4, fixed_abs, tag = 'smem constant byte address 0x4 - core index']
  #allocation1 [shape = 'u32[72,128]{1,0:T(1,128)}', space=vmem, size = 0x9000, scoped, tag = 'internal scratch']
  %s0 = inlined_call_operand.hbm [shape: f32[2,8,32], index: 0, kind: input, shape index: {}]
  %s1 = inlined_call_operand.hbm [shape: f32[32,96], index: 1, kind: input, shape index: {}]
  %s2 = inlined_call_operand.vmem [shape: f32[1,96], index: 2, kind: input, shape index: {}]
  %s3 = inlined_call_operand.hbm [shape: f32[32,32], index: 3, kind: input, shape index: {}]
  %s4 = inlined_call_operand.vmem [shape: f32[1,32], index: 4, kind: input, shape index: {}]
  %s5 = inlined_call_operand.hbm [shape: f32[2,8,32], index: 5, kind: output, shape index: {0}]
  %s6 = inlined_call_operand.hbm [shape: f32[2,1,32], index: 6, kind: output, shape index: {1}]
  %s7 = inlined_call_operand.hbm [shape: f32[2,1,32], index: 7, kind: output, shape index: {2}]
  %8 = xla_tuple %s5, %s6, %s7
  %s9 = sld [smem:[#allocation0]]
  $region81: #{tpu_custom_call.1} parent=0
    _
  %s11 = ssub.s32 1, %s9
  %s12 = scalar_select 0, %s11, %s9
  $region1: #{tpu_custom_call.1} parent=0
    #allocation2 [shape = 'u8[8192]{0}', space=vmem, size = 0x2000, scoped, tag = 'input window, operand 0']
    #allocation3 [shape = 's32[2]{0}', space=sflag, size = 0x8, scoped, tag = 'scoped memory for tpu_custom_call.1']
    #allocation4 [shape = 's32[2]{0}', space=sflag, size = 0x8, scoped, tag = 'scoped memory for tpu_custom_call.1']
    #allocation5 [shape = 'u8[16384]{0}', space=vmem, size = 0x4000, scoped, tag = 'input window, operand 1, single buffered']
    #allocation6 [shape = 's32[1]{0}', space=sflag, size = 0x4, scoped, tag = 'scoped memory for tpu_custom_call.1']
    #allocation7 [shape = 'u8[16384]{0}', space=vmem, size = 0x4000, scoped, tag = 'input window, operand 3, single buffered']
    #allocation8 [shape = 'u8[8192]{0}', space=vmem, size = 0x2000, scoped, tag = 'output window, operand 0']
    #allocation9 [shape = 'u8[1024]{0}', space=vmem, size = 0x400, scoped, tag = 'output window, operand 1']
    #allocation10 [shape = 's32[2]{0}', space=sflag, size = 0x8, scoped, tag = 'scoped memory for tpu_custom_call.1']
    #allocation11 [shape = 'u8[1024]{0}', space=vmem, size = 0x400, scoped, tag = 'output window, operand 2']
    %13 = vsyncpa [#allocation3], 0
    %s14 = scalar_lea.sflag [#allocation3], 1
    %15 = vsyncpa %s14, 0
    %16 = vsyncpa [#allocation6], 0
    %17 = vsyncpa [#allocation4], 0
    %s18 = scalar_lea.sflag [#allocation4], 1
    %19 = vsyncpa %s18, 0
    %20 = vsyncpa [#allocation10], 0
    %s21 = scalar_lea.sflag [#allocation10], 1
    %22 = vsyncpa %s21, 0
    loop: start=0, step=1, limit=4
    $region2: #{tpu_custom_call.1} parent=1 // loop_pre_header
      _
    $region3: #{tpu_custom_call.1} parent=1 // loop_header
      %s24 = sphi 0, %s28
      %p25 = scmp.ge.s32.totalorder %s24, 4
      %s34 = sphi 0, %s36
      %s37 = sphi 0, %s34
      %s38 = sphi 0, %s37
      %s54 = sphi 0, %s38
      %s58 = sphi 0, %s58
      %s60 = sphi 0, %s58
      %s61 = sphi 0, %s60
      %s75 = sphi 0, %s61
      %s79 = sphi 0, %s79
      %s81 = sphi 0, %s79
      %s82 = sphi 0, %s81
      %s96 = sphi 0, %s82
      %s100 = sphi 0, %s100
      %s102 = sphi 0, %s100
      %s103 = sphi 0, %s102
      %s117 = sphi 0, %s103
      %s121 = sphi 0, %s121
      %s123 = sphi 0, %s121
      %s124 = sphi 0, %s123
      %s138 = sphi 0, %s124
      %s144 = sphi 0, %s146
      %s147 = sphi 0, %s144
      %s148 = sphi 0, %s147
      %s164 = sphi 0, %s148
      %s170 = sphi 0, %s172
      %s173 = sphi 0, %s170
      %s174 = sphi 0, %s173
      %s190 = sphi 0, %s174
      %s196 = sphi 0, %s198
      %s199 = sphi 0, %s196
      %s200 = sphi 0, %s199
      %s216 = sphi 0, %s200
    $region4: #{tpu_custom_call.1} parent=1 // loop_header_branch
      %27 = sbr.rel (%p25) target = $region8
    $region5: #{tpu_custom_call.1} parent=1 // loop_body
      %s29 = ssub.s32 %s24, 1
      %s30 = ssub.s32 %s24, 2
      %s31 = sadd.s32 %s24, 1
      %s32 = ssub.s32 %s24, %s31
      %p33 = scmp.eq.s32.totalorder %s32, 0
      %s35 = sadd.s32 %s34, 1
      %s36 = scalar_select %p33, %s34, %s35
      %p39 = pneg %p33
      %p40 = scmp.eq.s32.totalorder %s24, 1
      %p41 = por %p39, %p40
      %p42 = scmp.ne.s32.totalorder %s34, %s37
      %p43 = scmp.eq.s32.totalorder %s24, 0
      %p44 = por %p42, %p43
      %p45 = scmp.ne.s32.totalorder %s34, %s37
      %p46 = scmp.eq.s32.totalorder %s29, 1
      %p47 = por %p45, %p46
      %p48 = scmp.ne.s32.totalorder %s37, %s38
      %p49 = scmp.eq.s32.totalorder %s29, 0
      %p50 = por %p48, %p49
      %p51 = scmp.ne.s32.totalorder %s37, %s38
      %p52 = scmp.eq.s32.totalorder %s30, 1
      %p53 = por %p51, %p52
      %p55 = scmp.ne.s32.totalorder %s38, %s54
      %p56 = scmp.eq.s32.totalorder %s30, 0
      %p57 = por %p55, %p56
      %s59 = sadd.s32 %s58, 1
      %p62 = scmp.eq.s32.totalorder %s24, 1
      %p63 = scmp.ne.s32.totalorder %s58, %s60
      %p64 = scmp.eq.s32.totalorder %s24, 0
      %p65 = por %p63, %p64
      %p66 = scmp.ne.s32.totalorder %s58, %s60
      %p67 = scmp.eq.s32.totalorder %s29, 1
      %p68 = por %p66, %p67
      %p69 = scmp.ne.s32.totalorder %s60, %s61
      %p70 = scmp.eq.s32.totalorder %s29, 0
      %p71 = por %p69, %p70
      %p72 = scmp.ne.s32.totalorder %s60, %s61
      %p73 = scmp.eq.s32.totalorder %s30, 1
      %p74 = por %p72, %p73
      %p76 = scmp.ne.s32.totalorder %s61, %s75
      %p77 = scmp.eq.s32.totalorder %s30, 0
      %p78 = por %p76, %p77
      %s80 = sadd.s32 %s79, 1
      %p83 = scmp.eq.s32.totalorder %s24, 1
      %p84 = scmp.ne.s32.totalorder %s79, %s81
      %p85 = scmp.eq.s32.totalorder %s24, 0
      %p86 = por %p84, %p85
      %p87 = scmp.ne.s32.totalorder %s79, %s81
      %p88 = scmp.eq.s32.totalorder %s29, 1
      %p89 = por %p87, %p88
      %p90 = scmp.ne.s32.totalorder %s81, %s82
      %p91 = scmp.eq.s32.totalorder %s29, 0
      %p92 = por %p90, %p91
      %p93 = scmp.ne.s32.totalorder %s81, %s82
      %p94 = scmp.eq.s32.totalorder %s30, 1
      %p95 = por %p93, %p94
      %p97 = scmp.ne.s32.totalorder %s82, %s96
      %p98 = scmp.eq.s32.totalorder %s30, 0
      %p99 = por %p97, %p98
      %s101 = sadd.s32 %s100, 1
      %p104 = scmp.eq.s32.totalorder %s24, 1
      %p105 = scmp.ne.s32.totalorder %s100, %s102
      %p106 = scmp.eq.s32.totalorder %s24, 0
      %p107 = por %p105, %p106
      %p108 = scmp.ne.s32.totalorder %s100, %s102
      %p109 = scmp.eq.s32.totalorder %s29, 1
      %p110 = por %p108, %p109
      %p111 = scmp.ne.s32.totalorder %s102, %s103
      %p112 = scmp.eq.s32.totalorder %s29, 0
      %p113 = por %p111, %p112
      %p114 = scmp.ne.s32.totalorder %s102, %s103
      %p115 = scmp.eq.s32.totalorder %s30, 1
      %p116 = por %p114, %p115
      %p118 = scmp.ne.s32.totalorder %s103, %s117
      %p119 = scmp.eq.s32.totalorder %s30, 0
      %p120 = por %p118, %p119
      %s122 = sadd.s32 %s121, 1
      %p125 = scmp.eq.s32.totalorder %s24, 1
      %p126 = scmp.ne.s32.totalorder %s121, %s123
      %p127 = scmp.eq.s32.totalorder %s24, 0
      %p128 = por %p126, %p127
      %p129 = scmp.ne.s32.totalorder %s121, %s123
      %p130 = scmp.eq.s32.totalorder %s29, 1
      %p131 = por %p129, %p130
      %p132 = scmp.ne.s32.totalorder %s123, %s124
      %p133 = scmp.eq.s32.totalorder %s29, 0
      %p134 = por %p132, %p133
      %p135 = scmp.ne.s32.totalorder %s123, %s124
      %p136 = scmp.eq.s32.totalorder %s30, 1
      %p137 = por %p135, %p136
      %p139 = scmp.ne.s32.totalorder %s124, %s138
      %p140 = scmp.eq.s32.totalorder %s30, 0
      %p141 = por %p139, %p140
      %s142 = ssub.s32 %s24, %s31
      %p143 = scmp.eq.s32.totalorder %s142, 0
      %s145 = sadd.s32 %s144, 1
      %s146 = scalar_select %p143, %s144, %s145
      %p149 = pneg %p143
      %p150 = scmp.eq.s32.totalorder %s24, 1
      %p151 = por %p149, %p150
      %p152 = scmp.ne.s32.totalorder %s144, %s147
      %p153 = scmp.eq.s32.totalorder %s24, 0
      %p154 = por %p152, %p153
      %p155 = scmp.ne.s32.totalorder %s144, %s147
      %p156 = scmp.eq.s32.totalorder %s29, 1
      %p157 = por %p155, %p156
      %p158 = scmp.ne.s32.totalorder %s147, %s148
      %p159 = scmp.eq.s32.totalorder %s29, 0
      %p160 = por %p158, %p159
      %p161 = scmp.ne.s32.totalorder %s147, %s148
      %p162 = scmp.eq.s32.totalorder %s30, 1
      %p163 = por %p161, %p162
      %p165 = scmp.ne.s32.totalorder %s148, %s164
      %p166 = scmp.eq.s32.totalorder %s30, 0
      %p167 = por %p165, %p166
      %s168 = ssub.s32 %s24, %s31
      %p169 = scmp.eq.s32.totalorder %s168, 0
      %s171 = sadd.s32 %s170, 1
      %s172 = scalar_select %p169, %s170, %s171
      %p175 = pneg %p169
      %p176 = scmp.eq.s32.totalorder %s24, 1
      %p177 = por %p175, %p176
      %p178 = scmp.ne.s32.totalorder %s170, %s173
      %p179 = scmp.eq.s32.totalorder %s24, 0
      %p180 = por %p178, %p179
      %p181 = scmp.ne.s32.totalorder %s170, %s173
      %p182 = scmp.eq.s32.totalorder %s29, 1
      %p183 = por %p181, %p182
      %p184 = scmp.ne.s32.totalorder %s173, %s174
      %p185 = scmp.eq.s32.totalorder %s29, 0
      %p186 = por %p184, %p185
      %p187 = scmp.ne.s32.totalorder %s173, %s174
      %p188 = scmp.eq.s32.totalorder %s30, 1
      %p189 = por %p187, %p188
      %p191 = scmp.ne.s32.totalorder %s174, %s190
      %p192 = scmp.eq.s32.totalorder %s30, 0
      %p193 = por %p191, %p192
      %s194 = ssub.s32 %s24, %s31
      %p195 = scmp.eq.s32.totalorder %s194, 0
      %s197 = sadd.s32 %s196, 1
      %s198 = scalar_select %p195, %s196, %s197
      %p201 = pneg %p195
      %p202 = scmp.eq.s32.totalorder %s24, 1
      %p203 = por %p201, %p202
      %p204 = scmp.ne.s32.totalorder %s196, %s199
      %p205 = scmp.eq.s32.totalorder %s24, 0
      %p206 = por %p204, %p205
      %p207 = scmp.ne.s32.totalorder %s196, %s199
      %p208 = scmp.eq.s32.totalorder %s29, 1
      %p209 = por %p207, %p208
      %p210 = scmp.ne.s32.totalorder %s199, %s200
      %p211 = scmp.eq.s32.totalorder %s29, 0
      %p212 = por %p210, %p211
      %p213 = scmp.ne.s32.totalorder %s199, %s200
      %p214 = scmp.eq.s32.totalorder %s30, 1
      %p215 = por %p213, %p214
      %p217 = scmp.ne.s32.totalorder %s200, %s216
      %p218 = scmp.eq.s32.totalorder %s30, 0
      %p219 = por %p217, %p218
      %p220 = scmp.le.s32.totalorder 1, %s24
      %p221 = scmp.lt.s32.totalorder %s24, 3
      %p222 = pnand %p220, %p221
      %p223 = pneg %p222
      // Predicated region
      $region9: #{tpu_custom_call.1} parent=5 // pred_check
        _
      $region10: #{tpu_custom_call.1} parent=5 // pred_check_branch
        %225 = sbr.rel (%p222) target = $region12
      $region11: #{tpu_custom_call.1} parent=5 // pred_region
        %s226 = ssub.s32 %s24, 1
        // Predicated region
        $region13: #{tpu_custom_call.1} parent=11 // pred_check
          %p227 = pneg %p71
        $region14: #{tpu_custom_call.1} parent=11 // pred_check_branch
          %229 = sbr.rel (%p227) target = $region16
        $region15: #{tpu_custom_call.1} parent=11 // pred_region
          %231 = vsyncadd [#allocation6], 0
          %s232 = sshll.u32 %s1, 4
          %s233 = int_to_ptr.hbm [resolvable:$true] %s232
          %s234 = sshll.u32 [#allocation5], 4
          %s235 = int_to_ptr.vmem [resolvable:$true] %s234
          %240 = dma.hbm_to_vmem [thread:$0]  %s233, 512, %s235, [#allocation6], 128, 128, 8
        $region16: #{tpu_custom_call.1} parent=11 // pred_fallthru
          _
        // Predicated region
        $region17: #{tpu_custom_call.1} parent=11 // pred_check
          %p241 = pneg %p92
        $region18: #{tpu_custom_call.1} parent=11 // pred_check_branch
          %243 = sbr.rel (%p241) target = $region20
        $region19: #{tpu_custom_call.1} parent=11 // pred_region
          _
        $region20: #{tpu_custom_call.1} parent=11 // pred_fallthru
          _
        // Predicated region
        $region21: #{tpu_custom_call.1} parent=11 // pred_check
          %p244 = pneg %p113
        $region22: #{tpu_custom_call.1} parent=11 // pred_check_branch
          %246 = sbr.rel (%p244) target = $region24
        $region23: #{tpu_custom_call.1} parent=11 // pred_region
          %248 = vsyncadd [#allocation6], 0
          %s249 = sshll.u32 %s3, 4
          %s250 = int_to_ptr.hbm [resolvable:$true] %s249
          %s251 = sshll.u32 [#allocation7], 4
          %s252 = int_to_ptr.vmem [resolvable:$true] %s251
          %257 = dma.hbm_to_vmem [thread:$0]  %s250, 512, %s252, [#allocation6], 128, 128, 8
        $region24: #{tpu_custom_call.1} parent=11 // pred_fallthru
          _
        // Predicated region
        $region25: #{tpu_custom_call.1} parent=11 // pred_check
          %p258 = pneg %p134
        $region26: #{tpu_custom_call.1} parent=11 // pred_check_branch
          %260 = sbr.rel (%p258) target = $region28
        $region27: #{tpu_custom_call.1} parent=11 // pred_region
          _
        $region28: #{tpu_custom_call.1} parent=11 // pred_fallthru
          _
      $region12: #{tpu_custom_call.1} parent=5 // pred_fallthru
        _
      %p261 = scmp.lt.s32.totalorder %s24, 2
      // Predicated region
      $region29: #{tpu_custom_call.1} parent=5 // pred_check
        %p262 = pneg %p261
      $region30: #{tpu_custom_call.1} parent=5 // pred_check_branch
        %264 = sbr.rel (%p262) target = $region32
      $region31: #{tpu_custom_call.1} parent=5 // pred_region
        // Predicated region
        $region33: #{tpu_custom_call.1} parent=31 // pred_check
          %p265 = pneg %p44
        $region34: #{tpu_custom_call.1} parent=31 // pred_check_branch
          %267 = sbr.rel (%p265) target = $region36
        $region35: #{tpu_custom_call.1} parent=31 // pred_region
          %s268 = sand.u32 %s34, 1
          %s269 = scalar_lea.sflag [#allocation3], %s268
          %s270 = sand.u32 %s34, 1
          %s271 = smul.addr %s270, 8
          %s272 = scalar_lea.vmem [#allocation2], %s271
          %274 = vsyncadd %s269, 0
          %s275 = smul.addr %s24, 8
          %s276 = scalar_lea.hbm %s0, %s275
          %s278 = sshll.u32 %s276, 4
          %s279 = int_to_ptr.hbm [resolvable:$true] %s278
          %s280 = sshll.u32 %s272, 4
          %s281 = int_to_ptr.vmem [resolvable:$true] %s280
          %283 = dma.hbm_to_vmem [thread:$0]  %s279, 128, %s281, %s269
        $region36: #{tpu_custom_call.1} parent=31 // pred_fallthru
          _
      $region32: #{tpu_custom_call.1} parent=5 // pred_fallthru
        _
      %p284 = scmp.le.s32.totalorder 1, %s24
      %p285 = scmp.lt.s32.totalorder %s24, 3
      %p286 = pnand %p284, %p285
      %p287 = pneg %p286
      // Predicated region
      $region37: #{tpu_custom_call.1} parent=5 // pred_check
        _
      $region38: #{tpu_custom_call.1} parent=5 // pred_check_branch
        %289 = sbr.rel (%p286) target = $region40
      $region39: #{tpu_custom_call.1} parent=5 // pred_region
        %s290 = ssub.s32 %s24, 1
        %s291 = sand.u32 %s37, 1
        %s292 = scalar_lea.sflag [#allocation3], %s291
        %s293 = sand.u32 %s37, 1
        %s294 = smul.addr %s293, 8
        %s295 = scalar_lea.vmem [#allocation2], %s294
        // Predicated region
        $region41: #{tpu_custom_call.1} parent=39 // pred_check
          %p296 = pneg %p50
        $region42: #{tpu_custom_call.1} parent=39 // pred_check_branch
          %298 = sbr.rel (%p296) target = $region44
        $region43: #{tpu_custom_call.1} parent=39 // pred_region
          %300 = dma.done %s292, 128
        $region44: #{tpu_custom_call.1} parent=39 // pred_fallthru
          _
        // Predicated region
        $region45: #{tpu_custom_call.1} parent=39 // pred_check
          %p301 = pneg %p71
        $region46: #{tpu_custom_call.1} parent=39 // pred_check_branch
          %303 = sbr.rel (%p301) target = $region48
        $region47: #{tpu_custom_call.1} parent=39 // pred_region
          %305 = dma.done [#allocation6], 512
        $region48: #{tpu_custom_call.1} parent=39 // pred_fallthru
          _
        // Predicated region
        $region49: #{tpu_custom_call.1} parent=39 // pred_check
          %p306 = pneg %p113
        $region50: #{tpu_custom_call.1} parent=39 // pred_check_branch
          %308 = sbr.rel (%p306) target = $region52
        $region51: #{tpu_custom_call.1} parent=39 // pred_region
          %310 = dma.done [#allocation6], 512
        $region52: #{tpu_custom_call.1} parent=39 // pred_fallthru
          _
        %s311 = sand.u32 %s37, 1
        %s312 = scalar_lea.sflag [#allocation3], %s311
        %s313 = sand.u32 %s37, 1
        %s314 = smul.addr %s313, 8
        %s315 = scalar_lea.vmem [#allocation2], %s314
        %p316 = pneg %p50
        %p317 = pneg %p47
        %p318 = pneg %p71
        %p319 = pneg %p68
        %p320 = pneg %p92
        %p321 = pneg %p89
        %p322 = pneg %p113
        %p323 = pneg %p110
        %p324 = pneg %p134
        %p325 = pneg %p131
        %p326 = pneg %p160
        %p327 = pneg %p157
        %s328 = sand.u32 %s147, 1
        %s329 = scalar_lea.sflag [#allocation4], %s328
        %s330 = sand.u32 %s147, 1
        %s331 = smul.addr %s330, 8
        %s332 = scalar_lea.vmem [#allocation8], %s331
        %p333 = pneg %p186
        %p334 = pneg %p183
        %s335 = sand.u32 %s29, 1
        %s336 = scalar_lea.sflag [#allocation10], %s335
        %s337 = sand.u32 %s173, 1
        %s338 = scalar_lea.vmem [#allocation9], %s337
        %p339 = pneg %p212
        %p340 = pneg %p209
        %s341 = sand.u32 %s29, 1
        %s342 = scalar_lea.sflag [#allocation10], %s341
        %s343 = sand.u32 %s199, 1
        %s344 = scalar_lea.vmem [#allocation11], %s343
        %v345 = vld [vmem:[%s295] sm:$0xff]
        %v346 = vld [vmem:[#allocation5] sm:$0xff]
        %v347 = vld [vmem:[#allocation5 + $0x8] sm:$0xff]
        %v348 = vld [vmem:[#allocation5 + $0x10] sm:$0xff]
        %v349 = vld [vmem:[#allocation5 + $0x18] sm:$0xff]
        %v350 = vld [vmem:[%s2] sm:$0x1]
        %v352 = vperm.slane %v350, 0
        %vm354 = vcmask 261120
        %v356 = vsel %vm354, %v345, 0
        %358 = vmatpush.msra.mxu0 0.0
        %359 = vmatpush.msra.mxu0 0.0
        %360 = vmatpush.msra.mxu0 0.0
        %361 = vmatpush.msra.mxu0 0.0
        %362 = vmatpush.msra.mxu0 0.0
        %363 = vmatpush.msra.mxu0 0.0
        %364 = vmatpush.msra.mxu0 0.0
        %365 = vmatpush.msra.mxu0 0.0
        %366 = vmatpush.msra.mxu0 0.0
        %367 = vmatpush.msra.mxu0 0.0
        %368 = vmatpush.msra.mxu0 0.0
        %369 = vmatpush.msra.mxu0 0.0
        %370 = vmatpush.msra.mxu0 %v349
        %371 = vmatpush.msra.mxu0 %v348
        %372 = vmatpush.msra.mxu0 %v347
        %373 = vmatpush.msra.mxu0 %v346
        %374 = vmatmul.f32.gmra.mxu0 %v356
        %v375 = vpop.f32.mrf.mxu0
        %v376 = vadd.f32 %v352, %v375
        %377 = vdwg.mxu0
        %v378 = vmul.f32 %v376, 0.35355338
        %380 = vrot.lane.b32.xlu0 %v376, 96
        %v381 = vpop.permute.xlu0 %380
        %vm382 = vcmask 64512
        %v384 = vsel %vm382, %v378, 0
        %v386 = vsel %vm382, %v381, 0
        %388 = vmatpush.xpose.msra.mxu0 0.0
        %389 = vmatpush.xpose.msra.mxu0 0.0
        %390 = vmatpush.xpose.msra.mxu0 0.0
        %391 = vmatpush.xpose.msra.mxu0 0.0
        %392 = vmatpush.xpose.msra.mxu0 0.0
        %393 = vmatpush.xpose.msra.mxu0 0.0
        %394 = vmatpush.xpose.msra.mxu0 0.0
        %395 = vmatpush.xpose.msra.mxu0 0.0
        %396 = vmatpush.xpose.msra.mxu0 0.0
        %397 = vmatpush.xpose.msra.mxu0 0.0
        %398 = vmatpush.xpose.msra.mxu0 0.0
        %399 = vmatpush.xpose.msra.mxu0 0.0
        %400 = vmatpush.xpose.msra.mxu0 0.0
        %401 = vmatpush.xpose.msra.mxu0 0.0
        %402 = vmatpush.xpose.msra.mxu0 0.0
        %403 = vmatpush.xpose.msra.mxu0 %v386
        %404 = vmatmul.f32.gmra.mxu0 %v384
        %v405 = vpop.f32.mrf.mxu0
        %v406 = vadd.f32 0.0, %v405
        %407 = vdwg.mxu0
        %v408 = vsel %vm382, %v406, -inf
        %409 = vmax.xlane.f32.xlu0 %v408
        %v410 = vpop.xlane.xlu0 %409
        %v411 = vsub.f32 %v406, %v410
        %v412 = vmul.f32 %v411, 1.442695
        %v413 = vpow.pop %v412
        %v414 = vsel %vm382, %v413, 0.0
        %415 = vadd.xlane.f32.xlu0 %v414
        %v416 = vpop.xlane.xlu0 %415
        %v417 = vrcp.pop %v416
        %v418 = vmul.f32 %v413, %v417
        %419 = vrot.lane.b32.xlu0 %v376, 64
        %v420 = vpop.permute.xlu0 %419
        %v423 = vsel %vm382, %v418, 0
        %425 = vmatpush.msra.mxu0 0.0
        %426 = vmatpush.msra.mxu0 0.0
        %427 = vmatpush.msra.mxu0 0.0
        %428 = vmatpush.msra.mxu0 0.0
        %429 = vmatpush.msra.mxu0 0.0
        %430 = vmatpush.msra.mxu0 0.0
        %431 = vmatpush.msra.mxu0 0.0
        %432 = vmatpush.msra.mxu0 0.0
        %433 = vmatpush.msra.mxu0 0.0
        %434 = vmatpush.msra.mxu0 0.0
        %435 = vmatpush.msra.mxu0 0.0
        %436 = vmatpush.msra.mxu0 0.0
        %437 = vmatpush.msra.mxu0 0.0
        %438 = vmatpush.msra.mxu0 0.0
        %439 = vmatpush.msra.mxu0 0.0
        %440 = vmatpush.msra.mxu0 %v420
        %441 = vmatmul.f32.gmra.mxu0 %v423
        %v442 = vpop.f32.mrf.mxu0
        %v443 = vadd.f32 0.0, %v442
        %444 = vdwg.mxu0
        %445 = vrot.lane.b32.xlu0 %v378, 120
        %v446 = vpop.permute.xlu0 %445
        %447 = vrot.lane.b32.xlu0 %v376, 88
        %v448 = vpop.permute.xlu0 %447
        %v449 = vsel %vm382, %v446, 0
        %v451 = vsel %vm382, %v448, 0
        %453 = vmatpush.xpose.msra.mxu0 0.0
        %454 = vmatpush.xpose.msra.mxu0 0.0
        %455 = vmatpush.xpose.msra.mxu0 0.0
        %456 = vmatpush.xpose.msra.mxu0 0.0
        %457 = vmatpush.xpose.msra.mxu0 0.0
        %458 = vmatpush.xpose.msra.mxu0 0.0
        %459 = vmatpush.xpose.msra.mxu0 0.0
        %460 = vmatpush.xpose.msra.mxu0 0.0
        %461 = vmatpush.xpose.msra.mxu0 0.0
        %462 = vmatpush.xpose.msra.mxu0 0.0
        %463 = vmatpush.xpose.msra.mxu0 0.0
        %464 = vmatpush.xpose.msra.mxu0 0.0
        %465 = vmatpush.xpose.msra.mxu0 0.0
        %466 = vmatpush.xpose.msra.mxu0 0.0
        %467 = vmatpush.xpose.msra.mxu0 0.0
        %468 = vmatpush.xpose.msra.mxu0 %v451
        %469 = vmatmul.f32.gmra.mxu0 %v449
        %v470 = vpop.f32.mrf.mxu0
        %v471 = vadd.f32 0.0, %v470
        %472 = vdwg.mxu0
        %v473 = vsel %vm382, %v471, -inf
        %474 = vmax.xlane.f32.xlu0 %v473
        %v475 = vpop.xlane.xlu0 %474
        %v476 = vsub.f32 %v471, %v475
        %v477 = vmul.f32 %v476, 1.442695
        %v478 = vpow.pop %v477
        %v479 = vsel %vm382, %v478, 0.0
        %480 = vadd.xlane.f32.xlu0 %v479
        %v481 = vpop.xlane.xlu0 %480
        %v482 = vrcp.pop %v481
        %v483 = vmul.f32 %v478, %v482
        %484 = vrot.lane.b32.xlu0 %v376, 56
        %v485 = vpop.permute.xlu0 %484
        %v488 = vsel %vm382, %v483, 0
        %490 = vmatpush.msra.mxu0 0.0
        %491 = vmatpush.msra.mxu0 0.0
        %492 = vmatpush.msra.mxu0 0.0
        %493 = vmatpush.msra.mxu0 0.0
        %494 = vmatpush.msra.mxu0 0.0
        %495 = vmatpush.msra.mxu0 0.0
        %496 = vmatpush.msra.mxu0 0.0
        %497 = vmatpush.msra.mxu0 0.0
        %498 = vmatpush.msra.mxu0 0.0
        %499 = vmatpush.msra.mxu0 0.0
        %500 = vmatpush.msra.mxu0 0.0
        %501 = vmatpush.msra.mxu0 0.0
        %502 = vmatpush.msra.mxu0 0.0
        %503 = vmatpush.msra.mxu0 0.0
        %504 = vmatpush.msra.mxu0 0.0
        %505 = vmatpush.msra.mxu0 %v485
        %506 = vmatmul.f32.gmra.mxu0 %v488
        %v507 = vpop.f32.mrf.mxu0
        %v508 = vadd.f32 0.0, %v507
        %509 = vdwg.mxu0
        %510 = vrot.lane.b32.xlu0 %v378, 112
        %v511 = vpop.permute.xlu0 %510
        %512 = vrot.lane.b32.xlu0 %v376, 80
        %v513 = vpop.permute.xlu0 %512
        %v514 = vsel %vm382, %v511, 0
        %v516 = vsel %vm382, %v513, 0
        %518 = vmatpush.xpose.msra.mxu0 0.0
        %519 = vmatpush.xpose.msra.mxu0 0.0
        %520 = vmatpush.xpose.msra.mxu0 0.0
        %521 = vmatpush.xpose.msra.mxu0 0.0
        %522 = vmatpush.xpose.msra.mxu0 0.0
        %523 = vmatpush.xpose.msra.mxu0 0.0
        %524 = vmatpush.xpose.msra.mxu0 0.0
        %525 = vmatpush.xpose.msra.mxu0 0.0
        %526 = vmatpush.xpose.msra.mxu0 0.0
        %527 = vmatpush.xpose.msra.mxu0 0.0
        %528 = vmatpush.xpose.msra.mxu0 0.0
        %529 = vmatpush.xpose.msra.mxu0 0.0
        %530 = vmatpush.xpose.msra.mxu0 0.0
        %531 = vmatpush.xpose.msra.mxu0 0.0
        %532 = vmatpush.xpose.msra.mxu0 0.0
        %533 = vmatpush.xpose.msra.mxu0 %v516
        %534 = vmatmul.f32.gmra.mxu0 %v514
        %v535 = vpop.f32.mrf.mxu0
        %v536 = vadd.f32 0.0, %v535
        %537 = vdwg.mxu0
        %v538 = vsel %vm382, %v536, -inf
        %539 = vmax.xlane.f32.xlu0 %v538
        %v540 = vpop.xlane.xlu0 %539
        %v541 = vsub.f32 %v536, %v540
        %v542 = vmul.f32 %v541, 1.442695
        %v543 = vpow.pop %v542
        %v544 = vsel %vm382, %v543, 0.0
        %545 = vadd.xlane.f32.xlu0 %v544
        %v546 = vpop.xlane.xlu0 %545
        %v547 = vrcp.pop %v546
        %v548 = vmul.f32 %v543, %v547
        %549 = vrot.lane.b32.xlu0 %v376, 48
        %v550 = vpop.permute.xlu0 %549
        %v553 = vsel %vm382, %v548, 0
        %555 = vmatpush.msra.mxu0 0.0
        %556 = vmatpush.msra.mxu0 0.0
        %557 = vmatpush.msra.mxu0 0.0
        %558 = vmatpush.msra.mxu0 0.0
        %559 = vmatpush.msra.mxu0 0.0
        %560 = vmatpush.msra.mxu0 0.0
        %561 = vmatpush.msra.mxu0 0.0
        %562 = vmatpush.msra.mxu0 0.0
        %563 = vmatpush.msra.mxu0 0.0
        %564 = vmatpush.msra.mxu0 0.0
        %565 = vmatpush.msra.mxu0 0.0
        %566 = vmatpush.msra.mxu0 0.0
        %567 = vmatpush.msra.mxu0 0.0
        %568 = vmatpush.msra.mxu0 0.0
        %569 = vmatpush.msra.mxu0 0.0
        %570 = vmatpush.msra.mxu0 %v550
        %571 = vmatmul.f32.gmra.mxu0 %v553
        %v572 = vpop.f32.mrf.mxu0
        %v573 = vadd.f32 0.0, %v572
        %574 = vdwg.mxu0
        %575 = vrot.lane.b32.xlu0 %v378, 104
        %v576 = vpop.permute.xlu0 %575
        %577 = vrot.lane.b32.xlu0 %v376, 72
        %v578 = vpop.permute.xlu0 %577
        %v579 = vsel %vm382, %v576, 0
        %v581 = vsel %vm382, %v578, 0
        %583 = vmatpush.xpose.msra.mxu0 0.0
        %584 = vmatpush.xpose.msra.mxu0 0.0
        %585 = vmatpush.xpose.msra.mxu0 0.0
        %586 = vmatpush.xpose.msra.mxu0 0.0
        %587 = vmatpush.xpose.msra.mxu0 0.0
        %588 = vmatpush.xpose.msra.mxu0 0.0
        %589 = vmatpush.xpose.msra.mxu0 0.0
        %590 = vmatpush.xpose.msra.mxu0 0.0
        %591 = vmatpush.xpose.msra.mxu0 0.0
        %592 = vmatpush.xpose.msra.mxu0 0.0
        %593 = vmatpush.xpose.msra.mxu0 0.0
        %594 = vmatpush.xpose.msra.mxu0 0.0
        %595 = vmatpush.xpose.msra.mxu0 0.0
        %596 = vmatpush.xpose.msra.mxu0 0.0
        %597 = vmatpush.xpose.msra.mxu0 0.0
        %598 = vmatpush.xpose.msra.mxu0 %v581
        %599 = vmatmul.f32.gmra.mxu0 %v579
        %v600 = vpop.f32.mrf.mxu0
        %v601 = vadd.f32 0.0, %v600
        %602 = vdwg.mxu0
        %v603 = vsel %vm382, %v601, -inf
        %604 = vmax.xlane.f32.xlu0 %v603
        %v605 = vpop.xlane.xlu0 %604
        %v606 = vsub.f32 %v601, %v605
        %v607 = vmul.f32 %v606, 1.442695
        %v608 = vpow.pop %v607
        %v609 = vsel %vm382, %v608, 0.0
        %610 = vadd.xlane.f32.xlu0 %v609
        %v611 = vpop.xlane.xlu0 %610
        %v612 = vrcp.pop %v611
        %v613 = vmul.f32 %v608, %v612
        %614 = vrot.lane.b32.xlu0 %v376, 40
        %v615 = vpop.permute.xlu0 %614
        %v618 = vsel %vm382, %v613, 0
        %620 = vmatpush.msra.mxu0 0.0
        %621 = vmatpush.msra.mxu0 0.0
        %622 = vmatpush.msra.mxu0 0.0
        %623 = vmatpush.msra.mxu0 0.0
        %624 = vmatpush.msra.mxu0 0.0
        %625 = vmatpush.msra.mxu0 0.0
        %626 = vmatpush.msra.mxu0 0.0
        %627 = vmatpush.msra.mxu0 0.0
        %628 = vmatpush.msra.mxu0 0.0
        %629 = vmatpush.msra.mxu0 0.0
        %630 = vmatpush.msra.mxu0 0.0
        %631 = vmatpush.msra.mxu0 0.0
        %632 = vmatpush.msra.mxu0 0.0
        %633 = vmatpush.msra.mxu0 0.0
        %634 = vmatpush.msra.mxu0 0.0
        %635 = vmatpush.msra.mxu0 %v615
        %636 = vmatmul.f32.gmra.mxu0 %v618
        %v637 = vpop.f32.mrf.mxu0
        %v638 = vadd.f32 0.0, %v637
        %639 = vdwg.mxu0
        %641 = vrot.lane.b32.xlu0 %v508, 8
        %v642 = vpop.permute.xlu0 %641
        %645 = vrot.lane.b32.xlu0 %v573, 16
        %v646 = vpop.permute.xlu0 %645
        %649 = vrot.lane.b32.xlu0 %v638, 24
        %v650 = vpop.permute.xlu0 %649
        %v652 = vsel %vm382, %v443, %v642
        %vm653 = vcmask 130048
        %v654 = vsel %vm653, %v652, %v646
        %vm655 = vcmask 195584
        %v656 = vsel %vm655, %v654, %v650
        %v657 = vld [vmem:[#allocation7] sm:$0xff]
        %v658 = vld [vmem:[#allocation7 + $0x8] sm:$0xff]
        %v659 = vld [vmem:[#allocation7 + $0x10] sm:$0xff]
        %v660 = vld [vmem:[#allocation7 + $0x18] sm:$0xff]
        %v661 = vld [vmem:[%s4] sm:$0x1]
        %v663 = vperm.slane %v661, 0
        %v666 = vsel %vm354, %v656, 0
        %668 = vmatpush.msra.mxu0 0.0
        %669 = vmatpush.msra.mxu0 0.0
        %670 = vmatpush.msra.mxu0 0.0
        %671 = vmatpush.msra.mxu0 0.0
        %672 = vmatpush.msra.mxu0 0.0
        %673 = vmatpush.msra.mxu0 0.0
        %674 = vmatpush.msra.mxu0 0.0
        %675 = vmatpush.msra.mxu0 0.0
        %676 = vmatpush.msra.mxu0 0.0
        %677 = vmatpush.msra.mxu0 0.0
        %678 = vmatpush.msra.mxu0 0.0
        %679 = vmatpush.msra.mxu0 0.0
        %680 = vmatpush.msra.mxu0 %v660
        %681 = vmatpush.msra.mxu0 %v659
        %682 = vmatpush.msra.mxu0 %v658
        %683 = vmatpush.msra.mxu0 %v657
        %684 = vmatmul.f32.gmra.mxu0 %v666
        %v685 = vpop.f32.mrf.mxu0
        %v686 = vadd.f32 %v663, %v685
        %687 = vdwg.mxu0
        %v688 = vadd.f32 %v345, %v686
        %689 = vst.msk [vmem:[%s332] sm:$0xff] %vm354, %v688
        %v690 = vsel %vm354, %v688, 0.0
        %v691 = vrot.slane %v690, 4
        %v692 = vadd.f32 %v690, %v691
        %v693 = vrot.slane %v692, 2
        %v694 = vadd.f32 %v692, %v693
        %v695 = vrot.slane %v694, 1
        %v696 = vadd.f32 %v694, %v695
        %vm697 = vcmask 253952
        %698 = vst.msk [vmem:[%s338] sm:$0x1] %vm697, %v696
        %v699 = vmul.f32 %v688, %v688
        %v700 = vsel %vm354, %v699, 0.0
        %v701 = vrot.slane %v700, 4
        %v702 = vadd.f32 %v700, %v701
        %v703 = vrot.slane %v702, 2
        %v704 = vadd.f32 %v702, %v703
        %v705 = vrot.slane %v704, 1
        %v706 = vadd.f32 %v704, %v705
        %707 = vst.msk [vmem:[%s344] sm:$0x1] %vm697, %v706
        %s708 = sand.u32 %s147, 1
        %s709 = scalar_lea.sflag [#allocation4], %s708
        %s710 = sand.u32 %s147, 1
        %s711 = smul.addr %s710, 8
        %s712 = scalar_lea.vmem [#allocation8], %s711
        %s713 = sand.u32 %s29, 1
        %s714 = scalar_lea.sflag [#allocation10], %s713
        %s715 = sand.u32 %s173, 1
        %s716 = scalar_lea.vmem [#allocation9], %s715
        %s717 = sand.u32 %s29, 1
        %s718 = scalar_lea.sflag [#allocation10], %s717
        %s719 = sand.u32 %s199, 1
        %s720 = scalar_lea.vmem [#allocation11], %s719
        // Predicated region
        $region53: #{tpu_custom_call.1} parent=39 // pred_check
          %p721 = pneg %p157
        $region54: #{tpu_custom_call.1} parent=39 // pred_check_branch
          %723 = sbr.rel (%p721) target = $region56
        $region55: #{tpu_custom_call.1} parent=39 // pred_region
          %725 = vsyncadd %s709, 0
          %s726 = smul.addr %s29, 8
          %s727 = scalar_lea.hbm %s5, %s726
          %s729 = sshll.u32 %s712, 4
          %s730 = int_to_ptr.vmem [resolvable:$true] %s729
          %s731 = sshll.u32 %s727, 4
          %s732 = int_to_ptr.hbm [resolvable:$true] %s731
          %734 = dma.vmem_to_hbm [thread:$0]  %s730, 128, %s732, %s709
        $region56: #{tpu_custom_call.1} parent=39 // pred_fallthru
          _
        // Predicated region
        $region57: #{tpu_custom_call.1} parent=39 // pred_check
          %p735 = pneg %p183
        $region58: #{tpu_custom_call.1} parent=39 // pred_check_branch
          %737 = sbr.rel (%p735) target = $region60
        $region59: #{tpu_custom_call.1} parent=39 // pred_region
          %739 = vsyncadd %s714, 0
          %s740 = scalar_lea.hbm %s6, %s29
          %s742 = sshll.u32 %s716, 4
          %s743 = int_to_ptr.vmem [resolvable:$true] %s742
          %s744 = sshll.u32 %s740, 4
          %s745 = int_to_ptr.hbm [resolvable:$true] %s744
          %747 = dma.vmem_to_hbm [thread:$0]  %s743, 16, %s745, %s714
        $region60: #{tpu_custom_call.1} parent=39 // pred_fallthru
          _
        // Predicated region
        $region61: #{tpu_custom_call.1} parent=39 // pred_check
          %p748 = pneg %p209
        $region62: #{tpu_custom_call.1} parent=39 // pred_check_branch
          %750 = sbr.rel (%p748) target = $region64
        $region63: #{tpu_custom_call.1} parent=39 // pred_region
          %752 = vsyncadd %s718, 0
          %s753 = scalar_lea.hbm %s7, %s29
          %s755 = sshll.u32 %s720, 4
          %s756 = int_to_ptr.vmem [resolvable:$true] %s755
          %s757 = sshll.u32 %s753, 4
          %s758 = int_to_ptr.hbm [resolvable:$true] %s757
          %760 = dma.vmem_to_hbm [thread:$0]  %s756, 16, %s758, %s718
        $region64: #{tpu_custom_call.1} parent=39 // pred_fallthru
          _
      $region40: #{tpu_custom_call.1} parent=5 // pred_fallthru
        _
      %p761 = scmp.le.s32.totalorder 2, %s24
      // Predicated region
      $region65: #{tpu_custom_call.1} parent=5 // pred_check
        %p762 = pneg %p761
      $region66: #{tpu_custom_call.1} parent=5 // pred_check_branch
        %764 = sbr.rel (%p762) target = $region68
      $region67: #{tpu_custom_call.1} parent=5 // pred_region
        %s765 = ssub.s32 %s24, 2
        // Predicated region
        $region69: #{tpu_custom_call.1} parent=67 // pred_check
          %p766 = pneg %p163
        $region70: #{tpu_custom_call.1} parent=67 // pred_check_branch
          %768 = sbr.rel (%p766) target = $region72
        $region71: #{tpu_custom_call.1} parent=67 // pred_region
          %s769 = sand.u32 %s148, 1
          %s770 = scalar_lea.sflag [#allocation4], %s769
          %s771 = sand.u32 %s148, 1
          %s772 = smul.addr %s771, 8
          %s773 = scalar_lea.vmem [#allocation8], %s772
          %775 = dma.done %s770, 128
        $region72: #{tpu_custom_call.1} parent=67 // pred_fallthru
          _
        // Predicated region
        $region73: #{tpu_custom_call.1} parent=67 // pred_check
          %p776 = pneg %p189
        $region74: #{tpu_custom_call.1} parent=67 // pred_check_branch
          %778 = sbr.rel (%p776) target = $region76
        $region75: #{tpu_custom_call.1} parent=67 // pred_region
          %s779 = sand.u32 %s30, 1
          %s780 = scalar_lea.sflag [#allocation10], %s779
          %s781 = sand.u32 %s174, 1
          %s782 = scalar_lea.vmem [#allocation9], %s781
          %784 = dma.done %s780, 16
        $region76: #{tpu_custom_call.1} parent=67 // pred_fallthru
          _
        // Predicated region
        $region77: #{tpu_custom_call.1} parent=67 // pred_check
          %p785 = pneg %p215
        $region78: #{tpu_custom_call.1} parent=67 // pred_check_branch
          %787 = sbr.rel (%p785) target = $region80
        $region79: #{tpu_custom_call.1} parent=67 // pred_region
          %s788 = sand.u32 %s30, 1
          %s789 = scalar_lea.sflag [#allocation10], %s788
          %s790 = sand.u32 %s200, 1
          %s791 = scalar_lea.vmem [#allocation11], %s790
          %793 = dma.done %s789, 16
        $region80: #{tpu_custom_call.1} parent=67 // pred_fallthru
          _
      $region68: #{tpu_custom_call.1} parent=5 // pred_fallthru
        _
    $region6: #{tpu_custom_call.1} parent=1 // loop_footer
      %s28 = sadd.s32 1, %s24
    $region7: #{tpu_custom_call.1} parent=1 // loop_footer_branch
      %23 = sbr.rel target = $region3
    $region8: #{tpu_custom_call.1} parent=1 // loop_exit
      _
    %794 = vsyncpa [#allocation3], 1
    %s795 = scalar_lea.sflag [#allocation3], 1
    %796 = vsyncpa %s795, 1
    %797 = vsyncpa [#allocation6], 1
    %798 = vsyncpa [#allocation4], 1
    %s799 = scalar_lea.sflag [#allocation4], 1
    %800 = vsyncpa %s799, 1
    %801 = vsyncpa [#allocation10], 1
    %s802 = scalar_lea.sflag [#allocation10], 1
    %803 = vsyncpa %s802, 1

</llo_original>
